<compile_context>
chip_gen: v6e
topology: v6e:2x2x1
jax: 0.10.0
libtpu: 0.0.40
codegen_flags: <defaults>
</compile_context>

<pallas_src>
import jax
import jax.numpy as jnp
from jax.experimental import pallas as pl
from jax.experimental.pallas import tpu as pltpu


# ----------------------------------------------------------------------------- helpers
def _round_up(n, m):
    return ((n + m - 1) // m) * m


def _pick_chunk(t, max_chunk):
    c = max(1, min(t, max_chunk))
    while t % c != 0:
        c -= 1
    return c


# --------------------------------------------------------------- parallel projection kernel
def _proj_bias_kernel(x_ref, w_ref, b_ref, o_ref):
    o_ref[...] = (
        jnp.dot(x_ref[...], w_ref[...], preferred_element_type=jnp.float32)
        + b_ref[...]
    ).astype(o_ref.dtype)


def _project(x, w, b, tn=128):
    """Lane-dense batched matmul + bias.  x:(M,K) w:(K,N) b:(1,N); M%8==0, K%128==0, N%128==0."""
    M, K = x.shape
    N = w.shape[1]
    return pl.pallas_call(
        _proj_bias_kernel,
        out_shape=jax.ShapeDtypeStruct((M, N), jnp.float32),
        grid_spec=pltpu.PrefetchScalarGridSpec(
            num_scalar_prefetch=0,
            grid=(N // tn,),
            in_specs=[
                pl.BlockSpec((M, K), lambda j: (0, 0)),
                pl.BlockSpec((K, tn), lambda j: (0, j)),
                pl.BlockSpec((1, tn), lambda j: (0, j)),
            ],
            out_specs=pl.BlockSpec((M, tn), lambda j: (0, j)),
        ),
        compiler_params=pltpu.CompilerParams(
            dimension_semantics=("parallel",),
        ),
    )(x, w, b)


# --------------------------------------------------------------- sequential recurrence kernel
def _make_recurrent_kernel(num_layers, chunk):
    def kernel(*args):
        # args = gx, wh_0, (wx_1, wh_1, b_1), ..., out_ref, h_sc, c_sc
        gx_ref = args[0]
        idx = 1
        wh_refs = [args[idx]]
        idx += 1
        wx_refs = [None]
        b_refs = [None]
        for _ in range(1, num_layers):
            wx_refs.append(args[idx])
            wh_refs.append(args[idx + 1])
            b_refs.append(args[idx + 2])
            idx += 3
        out_ref, h_sc, c_sc = args[idx], args[idx + 1], args[idx + 2]

        # reset_hidden(batch_size): zero initial states at the first time chunk.
        @pl.when(pl.program_id(0) == 0)
        def _():
            h_sc[...] = jnp.zeros_like(h_sc)
            c_sc[...] = jnp.zeros_like(c_sc)

        hp = h_sc.shape[-1]  # padded hidden size (multiple of 128)

        # pull carried state into values once per chunk
        h = [h_sc[l] for l in range(num_layers)]
        c = [c_sc[l] for l in range(num_layers)]

        # short static inner loop over the time chunk (fully unrolled)
        for tt in range(chunk):
            layer_in = None
            for l in range(num_layers):
                if l == 0:
                    # layer-0 x@Wx+b is precomputed (hoisted): gates = gx + h @ Wh
                    gates = gx_ref[tt] + jnp.dot(
                        h[0], wh_refs[0][...], preferred_element_type=jnp.float32)
                else:
                    gates = (
                        jnp.dot(layer_in, wx_refs[l][...], preferred_element_type=jnp.float32)
                        + jnp.dot(h[l], wh_refs[l][...], preferred_element_type=jnp.float32)
                        + b_refs[l][...]
                    )
                # lane-aligned gate slices [i | f | g | o]
                i_g = jax.nn.sigmoid(gates[:, 0 * hp:1 * hp])
                f_g = jax.nn.sigmoid(gates[:, 1 * hp:2 * hp])
                g_g = jnp.tanh(gates[:, 2 * hp:3 * hp])
                o_g = jax.nn.sigmoid(gates[:, 3 * hp:4 * hp])
                c[l] = f_g * c[l] + i_g * g_g
                h[l] = o_g * jnp.tanh(c[l])
                layer_in = h[l]
            out_ref[tt] = h[num_layers - 1]

        # write carried state back once per chunk
        for l in range(num_layers):
            h_sc[l] = h[l]
            c_sc[l] = c[l]

    return kernel


# ----------------------------------------------------------------------------- forward wrapper
def language_model_forward(tokens, params, *, time_chunk=8):
    """tokens: [T, B] int32.  Returns [T, B, vocab] float32 (stacked per-step outputs)."""
    emb_table = params["emb"]                       # (vocab, E)
    layers = params["layers"]                       # list of {wx:(in,4H), wh:(H,4H), b:(1,4H)}
    w_h2o = params["w_h2o"]                         # (H_last, V)
    b_o = params["b_o"]                             # (1, V)

    T, B = tokens.shape
    E = emb_table.shape[1]
    L = len(layers)
    V = w_h2o.shape[1]
    H_list = [layer["wh"].shape[0] for layer in layers]

    Bp = _round_up(B, 8)
    Ep = _round_up(E, 128)
    Hp = _round_up(max(H_list), 128)
    Vp = _round_up(V, 128)
    chunk = _pick_chunk(T, time_chunk)

    # ---- embedding gather (plain-JAX glue) + zero-pad to TPU-friendly dims
    x = jnp.take(emb_table, tokens, axis=0)                    # (T, B, E)
    x = jnp.pad(x, ((0, 0), (0, Bp - B), (0, Ep - E)))         # (T, Bp, Ep)

    # ---- pad weights; gate dim is padded PER GATE so gate slices stay lane-aligned
    def pad_gate_mat(w, in_pad):
        in_dim, four_h = w.shape
        h = four_h // 4
        w = w.reshape(in_dim, 4, h)
        w = jnp.pad(w, ((0, in_pad - in_dim), (0, 0), (0, Hp - h)))
        return w.reshape(in_pad, 4 * Hp)

    def pad_gate_bias(b):
        h = b.shape[-1] // 4
        b = b.reshape(1, 4, h)
        b = jnp.pad(b, ((0, 0), (0, 0), (0, Hp - h)))
        return b.reshape(1, 4 * Hp)

    wx0 = pad_gate_mat(layers[0]["wx"], Ep)                    # (Ep, 4Hp)
    b0 = pad_gate_bias(layers[0]["b"])                         # (1, 4Hp)
    wh_pads = [pad_gate_mat(layer["wh"], Hp) for layer in layers]
    wx_pads = [None] + [pad_gate_mat(layers[l]["wx"], Hp) for l in range(1, L)]
    b_pads = [None] + [pad_gate_bias(layers[l]["b"]) for l in range(1, L)]

    w_h2o_p = jnp.pad(w_h2o, ((0, Hp - H_list[-1]), (0, Vp - V)))   # (Hp, Vp)
    b_o_p = jnp.pad(b_o, ((0, 0), (0, Vp - V)))                     # (1, Vp)

    # ---- (1) hoisted time-parallel input projection: gx = x @ Wx0 + b0
    gx = _project(x.reshape(T * Bp, Ep), wx0, b0)              # (T*Bp, 4Hp)
    gx = gx.reshape(T, Bp, 4 * Hp)

    # ---- (2) sequential recurrence (chunk timesteps per grid step, state in VMEM scratch)
    kernel = _make_recurrent_kernel(L, chunk)
    in_specs = [pl.BlockSpec((chunk, Bp, 4 * Hp), lambda i: (i, 0, 0))]
    operands = [gx]
    in_specs.append(pl.BlockSpec((Hp, 4 * Hp), lambda i: (0, 0)))
    operands.append(wh_pads[0])
    for l in range(1, L):
        in_specs.append(pl.BlockSpec((Hp, 4 * Hp), lambda i: (0, 0)))
        operands.append(wx_pads[l])
        in_specs.append(pl.BlockSpec((Hp, 4 * Hp), lambda i: (0, 0)))
        operands.append(wh_pads[l])
        in_specs.append(pl.BlockSpec((1, 4 * Hp), lambda i: (0, 0)))
        operands.append(b_pads[l])

    h_seq = pl.pallas_call(
        kernel,
        out_shape=jax.ShapeDtypeStruct((T, Bp, Hp), jnp.float32),
        grid_spec=pltpu.PrefetchScalarGridSpec(
            num_scalar_prefetch=0,
            grid=(T // chunk,),
            in_specs=in_specs,
            out_specs=pl.BlockSpec((chunk, Bp, Hp), lambda i: (i, 0, 0)),
            scratch_shapes=[
                pltpu.VMEM((L, Bp, Hp), jnp.float32),   # h state per layer
                pltpu.VMEM((L, Bp, Hp), jnp.float32),   # c state per layer
            ],
        ),
        compiler_params=pltpu.CompilerParams(
            dimension_semantics=("arbitrary",),         # sequential recurrence over time
        ),
    )(*operands)

    # ---- (3) hoisted time-parallel output projection: logits = h @ W_h2o + b_o
    logits = _project(h_seq.reshape(T * Bp, Hp), w_h2o_p, b_o_p)   # (T*Bp, Vp)
    logits = logits.reshape(T, Bp, Vp)
    return logits[:, :B, :V]


# ----------------------------------------------------------------------------- reference (pure JAX)
def language_model_reference(tokens, params):
    x = jnp.take(params["emb"], tokens, axis=0)       # (T, B, E)
    T, B, _ = x.shape
    layers = params["layers"]
    hs = [jnp.zeros((B, l["wh"].shape[0]), jnp.float32) for l in layers]
    cs = [jnp.zeros((B, l["wh"].shape[0]), jnp.float32) for l in layers]
    outs = []
    for t in range(T):
        inp = x[t]
        for li, l in enumerate(layers):
            H = l["wh"].shape[0]
            gates = inp @ l["wx"] + hs[li] @ l["wh"] + l["b"]
            i_g = jax.nn.sigmoid(gates[:, 0 * H:1 * H])
            f_g = jax.nn.sigmoid(gates[:, 1 * H:2 * H])
            g_g = jnp.tanh(gates[:, 2 * H:3 * H])
            o_g = jax.nn.sigmoid(gates[:, 3 * H:4 * H])
            cs[li] = f_g * cs[li] + i_g * g_g
            hs[li] = o_g * jnp.tanh(cs[li])
            inp = hs[li]
        outs.append(inp @ params["w_h2o"] + params["b_o"])
    return jnp.stack(outs, axis=0)


# ----------------------------------------------------------------------------- parameter init
def init_params(key, vocab_size, emb_size, layer_size, num_layers):
    ks = jax.random.split(key, 2 + 3 * num_layers)
    params = {}
    params["emb"] = jax.random.normal(ks[0], (vocab_size, emb_size), jnp.float32) * 0.1
    layers = []
    in_size = emb_size
    for l in range(num_layers):
        H = layer_size[l]
        kx, kh = ks[1 + 3 * l], ks[2 + 3 * l]
        layers.append({
            "wx": jax.random.normal(kx, (in_size, 4 * H), jnp.float32) * (1.0 / jnp.sqrt(in_size)),
            "wh": jax.random.normal(kh, (H, 4 * H), jnp.float32) * (1.0 / jnp.sqrt(H)),
            "b": jnp.zeros((1, 4 * H), jnp.float32),
        })
        in_size = H
    params["layers"] = layers
    H_last = layer_size[-1]
    # xavier_normal_(W_h2o, gain=1.0) ; b_o = 0
    std = jnp.sqrt(2.0 / (H_last + vocab_size))
    params["w_h2o"] = jax.random.normal(ks[-1], (H_last, vocab_size), jnp.float32) * std
    params["b_o"] = jnp.zeros((1, vocab_size), jnp.float32)
    return params


# ----------------------------------------------------------------------------- main
if __name__ == "__main__":
    VOCAB, EMB, HIDDEN = 64, 32, 32
    T, B = 8, 8

    key = jax.random.PRNGKey(0)
    k_param, k_tok, k_param2 = jax.random.split(key, 3)
    tokens = jax.random.randint(k_tok, (T, B), 0, VOCAB, dtype=jnp.int32)

    # module default: num_layers=1 (time_chunk=4 -> grid=(2,), exercises state carry)
    params1 = init_params(k_param, VOCAB, EMB, [HIDDEN], 1)
    out1 = jax.block_until_ready(language_model_forward(tokens, params1, time_chunk=4))
    ref1 = language_model_reference(tokens, params1)
    assert out1.shape == (T, B, VOCAB)
    assert jnp.allclose(out1, ref1, atol=1e-4, rtol=1e-4), "Pallas mismatch (1-layer)"

    # stacked-cell config (num_layers=2, uneven layer sizes) exercises the multi-layer path
    params2 = init_params(k_param2, VOCAB, EMB, [HIDDEN, 48], 2)
    out2 = jax.block_until_ready(language_model_forward(tokens, params2, time_chunk=4))
    ref2 = language_model_reference(tokens, params2)
    assert out2.shape == (T, B, VOCAB)
    assert jnp.allclose(out2, ref2, atol=1e-4, rtol=1e-4), "Pallas mismatch (2-layer)"

    print("KERNEL_OK")
</pallas_src>

<mosaic_0001>
module attributes {stable_mosaic.version = 11 : i64} {
  func.func @_proj_bias_kernel(%arg0: i32, %arg1: memref<64x128xf32, #tpu.memory_space<vmem>>, %arg2: memref<128x128xf32, #tpu.memory_space<vmem>>, %arg3: memref<1x128xf32, #tpu.memory_space<vmem>>, %arg4: memref<64x128xf32, #tpu.memory_space<vmem>>) attributes {dimension_semantics = [#tpu.dimension_semantics<parallel>], iteration_bounds = array<i64: 4>, scalar_prefetch = 0 : i64, scratch_operands = 0 : i64, tpu.core_type = #tpu.core_type<tc>, window_params = [{pipeline_mode = #tpu.pipeline_mode<synchronous>, transform_indices = @transform_0, window_bounds = array<i64: 64, 128>}, {transform_indices = @transform_1, window_bounds = array<i64: 128, 128>}, {transform_indices = @transform_2, window_bounds = array<i64: 1, 128>}, {transform_indices = @transform_3, window_bounds = array<i64: 64, 128>}]} {
    %c0 = arith.constant 0 : index
    %c0_0 = arith.constant 0 : index
    %0 = vector.load %arg1[%c0, %c0_0] : memref<64x128xf32, #tpu.memory_space<vmem>>, vector<64x128xf32>
    %c0_1 = arith.constant 0 : index
    %c0_2 = arith.constant 0 : index
    %1 = vector.load %arg2[%c0_1, %c0_2] : memref<128x128xf32, #tpu.memory_space<vmem>>, vector<128x128xf32>
    %cst = arith.constant dense<0.000000e+00> : vector<64x128xf32>
    %2 = tpu.matmul %0, %1, %cst {dimension_numbers = #tpu.dot_dimension_numbers<[1], [0], [0], [1], [0, 0, 1, 1], [], []>} : vector<64x128xf32>, vector<128x128xf32>, vector<64x128xf32> -> vector<64x128xf32>
    %c0_3 = arith.constant 0 : index
    %c0_4 = arith.constant 0 : index
    %3 = vector.load %arg3[%c0_3, %c0_4] : memref<1x128xf32, #tpu.memory_space<vmem>>, vector<1x128xf32>
    %4 = vector.broadcast %3 : vector<1x128xf32> to vector<64x128xf32>
    %5 = arith.addf %2, %4 : vector<64x128xf32>
    %c0_5 = arith.constant 0 : index
    %c0_6 = arith.constant 0 : index
    %6 = vector.load %arg4[%c0_5, %c0_6] : memref<64x128xf32, #tpu.memory_space<vmem>>, vector<64x128xf32>
    tpu.vector_store %arg4[%c0_5, %c0_6], %5 {strides = array<i32>} : memref<64x128xf32, #tpu.memory_space<vmem>>, vector<64x128xf32>,
    return
  }
  func.func @transform_0(%arg0: i32) -> (i32, i32) {
    %c0_i32 = arith.constant 0 : i32
    %c0_i32_0 = arith.constant 0 : i32
    %c0_i32_1 = arith.constant 0 : i32
    return %c0_i32, %c0_i32_0 : i32, i32
  }
  func.func @transform_1(%arg0: i32) -> (i32, i32) {
    %c0_i32 = arith.constant 0 : i32
    %c0_i32_0 = arith.constant 0 : i32
    return %c0_i32, %arg0 : i32, i32
  }
  func.func @transform_2(%arg0: i32) -> (i32, i32) {
    %c0_i32 = arith.constant 0 : i32
    %c0_i32_0 = arith.constant 0 : i32
    return %c0_i32, %arg0 : i32, i32
  }
  func.func @transform_3(%arg0: i32) -> (i32, i32) {
    %c0_i32 = arith.constant 0 : i32
    %c0_i32_0 = arith.constant 0 : i32
    return %c0_i32, %arg0 : i32, i32
  }
}

</mosaic_0001>

<llo_original>
// kernel: tpu_custom_call.1
$region0: #{tpu_custom_call.1}
  #allocation0 [shape = 'u32[]', space=smem, size = 0x4, offset = 0x4, fixed_abs, tag = 'smem constant byte address 0x4 - core index']
  #allocation1 [shape = 'u32[144,128]{1,0:T(1,128)}', space=vmem, size = 0x12000, scoped, tag = 'internal scratch']
  %s0 = inlined_call_operand.hbm [shape: f32[64,128], index: 0, kind: input, shape index: {}]
  %s1 = inlined_call_operand.hbm [shape: f32[128,512], index: 1, kind: input, shape index: {}]
  %s2 = inlined_call_operand.hbm [shape: f32[1,512], index: 2, kind: input, shape index: {}]
  %s3 = inlined_call_operand.hbm [shape: f32[64,512], index: 3, kind: output, shape index: {}]
  %s4 = sld [smem:[#allocation0]]
  $region57: #{tpu_custom_call.1} parent=0
    _
  %s6 = ssub.s32 1, %s4
  %s7 = scalar_select 0, %s6, %s4
  $region1: #{tpu_custom_call.1} parent=0
    #allocation2 [shape = 'u8[32768]{0}', space=vmem, size = 0x8000, scoped, tag = 'input window, operand 0, single buffered']
    #allocation3 [shape = 's32[2]{0}', space=sflag, size = 0x8, scoped, tag = 'scoped memory for tpu_custom_call.1']
    #allocation4 [shape = 's32[2]{0}', space=sflag, size = 0x8, scoped, tag = 'scoped memory for tpu_custom_call.1']
    #allocation5 [shape = 'u8[131072]{0}', space=vmem, size = 0x20000, scoped, tag = 'input window, operand 1']
    #allocation6 [shape = 's32[2]{0}', space=sflag, size = 0x8, scoped, tag = 'scoped memory for tpu_custom_call.1']
    #allocation7 [shape = 'u8[1024]{0}', space=vmem, size = 0x400, scoped, tag = 'input window, operand 2']
    #allocation8 [shape = 'u8[65536]{0}', space=vmem, size = 0x10000, scoped, tag = 'output window, operand 0']
    %8 = vsyncpa [#allocation3], 0
    %9 = vsyncpa [#allocation6], 0
    %s10 = scalar_lea.sflag [#allocation6], 1
    %11 = vsyncpa %s10, 0
    %12 = vsyncpa [#allocation4], 0
    %s13 = scalar_lea.sflag [#allocation4], 1
    %14 = vsyncpa %s13, 0
    loop: start=0, step=1, limit=6
    $region2: #{tpu_custom_call.1} parent=1 // loop_pre_header
      _
    $region3: #{tpu_custom_call.1} parent=1 // loop_header
      %s16 = sphi 0, %s20
      %p17 = scmp.ge.s32.totalorder %s16, 6
      %s24 = sphi 0, %s24
      %s26 = sphi 0, %s24
      %s27 = sphi 0, %s26
      %s41 = sphi 0, %s27
      %s47 = sphi 0, %s49
      %s50 = sphi 0, %s47
      %s51 = sphi 0, %s50
      %s67 = sphi 0, %s51
      %s73 = sphi 0, %s75
      %s76 = sphi 0, %s73
      %s77 = sphi 0, %s76
      %s93 = sphi 0, %s77
      %s99 = sphi 0, %s101
      %s102 = sphi 0, %s99
      %s103 = sphi 0, %s102
      %s119 = sphi 0, %s103
    $region4: #{tpu_custom_call.1} parent=1 // loop_header_branch
      %19 = sbr.rel (%p17) target = $region8
    $region5: #{tpu_custom_call.1} parent=1 // loop_body
      %s21 = ssub.s32 %s16, 1
      %s22 = ssub.s32 %s16, 2
      %s23 = sadd.s32 %s16, 1
      %s25 = sadd.s32 %s24, 1
      %p28 = scmp.eq.s32.totalorder %s16, 3
      %p29 = scmp.ne.s32.totalorder %s24, %s26
      %p30 = scmp.eq.s32.totalorder %s16, 0
      %p31 = por %p29, %p30
      %p32 = scmp.ne.s32.totalorder %s24, %s26
      %p33 = scmp.eq.s32.totalorder %s21, 3
      %p34 = por %p32, %p33
      %p35 = scmp.ne.s32.totalorder %s26, %s27
      %p36 = scmp.eq.s32.totalorder %s21, 0
      %p37 = por %p35, %p36
      %p38 = scmp.ne.s32.totalorder %s26, %s27
      %p39 = scmp.eq.s32.totalorder %s22, 3
      %p40 = por %p38, %p39
      %p42 = scmp.ne.s32.totalorder %s27, %s41
      %p43 = scmp.eq.s32.totalorder %s22, 0
      %p44 = por %p42, %p43
      %s45 = ssub.s32 %s16, %s23
      %p46 = scmp.eq.s32.totalorder %s45, 0
      %s48 = sadd.s32 %s47, 1
      %s49 = scalar_select %p46, %s47, %s48
      %p52 = pneg %p46
      %p53 = scmp.eq.s32.totalorder %s16, 3
      %p54 = por %p52, %p53
      %p55 = scmp.ne.s32.totalorder %s47, %s50
      %p56 = scmp.eq.s32.totalorder %s16, 0
      %p57 = por %p55, %p56
      %p58 = scmp.ne.s32.totalorder %s47, %s50
      %p59 = scmp.eq.s32.totalorder %s21, 3
      %p60 = por %p58, %p59
      %p61 = scmp.ne.s32.totalorder %s50, %s51
      %p62 = scmp.eq.s32.totalorder %s21, 0
      %p63 = por %p61, %p62
      %p64 = scmp.ne.s32.totalorder %s50, %s51
      %p65 = scmp.eq.s32.totalorder %s22, 3
      %p66 = por %p64, %p65
      %p68 = scmp.ne.s32.totalorder %s51, %s67
      %p69 = scmp.eq.s32.totalorder %s22, 0
      %p70 = por %p68, %p69
      %s71 = ssub.s32 %s16, %s23
      %p72 = scmp.eq.s32.totalorder %s71, 0
      %s74 = sadd.s32 %s73, 1
      %s75 = scalar_select %p72, %s73, %s74
      %p78 = pneg %p72
      %p79 = scmp.eq.s32.totalorder %s16, 3
      %p80 = por %p78, %p79
      %p81 = scmp.ne.s32.totalorder %s73, %s76
      %p82 = scmp.eq.s32.totalorder %s16, 0
      %p83 = por %p81, %p82
      %p84 = scmp.ne.s32.totalorder %s73, %s76
      %p85 = scmp.eq.s32.totalorder %s21, 3
      %p86 = por %p84, %p85
      %p87 = scmp.ne.s32.totalorder %s76, %s77
      %p88 = scmp.eq.s32.totalorder %s21, 0
      %p89 = por %p87, %p88
      %p90 = scmp.ne.s32.totalorder %s76, %s77
      %p91 = scmp.eq.s32.totalorder %s22, 3
      %p92 = por %p90, %p91
      %p94 = scmp.ne.s32.totalorder %s77, %s93
      %p95 = scmp.eq.s32.totalorder %s22, 0
      %p96 = por %p94, %p95
      %s97 = ssub.s32 %s16, %s23
      %p98 = scmp.eq.s32.totalorder %s97, 0
      %s100 = sadd.s32 %s99, 1
      %s101 = scalar_select %p98, %s99, %s100
      %p104 = pneg %p98
      %p105 = scmp.eq.s32.totalorder %s16, 3
      %p106 = por %p104, %p105
      %p107 = scmp.ne.s32.totalorder %s99, %s102
      %p108 = scmp.eq.s32.totalorder %s16, 0
      %p109 = por %p107, %p108
      %p110 = scmp.ne.s32.totalorder %s99, %s102
      %p111 = scmp.eq.s32.totalorder %s21, 3
      %p112 = por %p110, %p111
      %p113 = scmp.ne.s32.totalorder %s102, %s103
      %p114 = scmp.eq.s32.totalorder %s21, 0
      %p115 = por %p113, %p114
      %p116 = scmp.ne.s32.totalorder %s102, %s103
      %p117 = scmp.eq.s32.totalorder %s22, 3
      %p118 = por %p116, %p117
      %p120 = scmp.ne.s32.totalorder %s103, %s119
      %p121 = scmp.eq.s32.totalorder %s22, 0
      %p122 = por %p120, %p121
      %p123 = scmp.le.s32.totalorder 1, %s16
      %p124 = scmp.lt.s32.totalorder %s16, 5
      %p125 = pnand %p123, %p124
      %p126 = pneg %p125
      // Predicated region
      $region9: #{tpu_custom_call.1} parent=5 // pred_check
        _
      $region10: #{tpu_custom_call.1} parent=5 // pred_check_branch
        %128 = sbr.rel (%p125) target = $region12
      $region11: #{tpu_custom_call.1} parent=5 // pred_region
        %s129 = ssub.s32 %s16, 1
        // Predicated region
        $region13: #{tpu_custom_call.1} parent=11 // pred_check
          %p130 = pneg %p37
        $region14: #{tpu_custom_call.1} parent=11 // pred_check_branch
          %132 = sbr.rel (%p130) target = $region16
        $region15: #{tpu_custom_call.1} parent=11 // pred_region
          %s134 = ssub.s32 1024, 1024
          %135 = vsyncadd [#allocation3], %s134
          %s136 = sshll.u32 [#allocation2], 4
          %s137 = int_to_ptr.vmem [resolvable:$true] %s136
          %142 = dma.hbm_to_vmem [thread:$0]  %s0, 1024, %s137, [#allocation3], 128, 128, 8
        $region16: #{tpu_custom_call.1} parent=11 // pred_fallthru
          _
      $region12: #{tpu_custom_call.1} parent=5 // pred_fallthru
        _
      %p143 = scmp.lt.s32.totalorder %s16, 4
      // Predicated region
      $region17: #{tpu_custom_call.1} parent=5 // pred_check
        %p144 = pneg %p143
      $region18: #{tpu_custom_call.1} parent=5 // pred_check_branch
        %146 = sbr.rel (%p144) target = $region20
      $region19: #{tpu_custom_call.1} parent=5 // pred_region
        // Predicated region
        $region21: #{tpu_custom_call.1} parent=19 // pred_check
          %p147 = pneg %p57
        $region22: #{tpu_custom_call.1} parent=19 // pred_check_branch
          %149 = sbr.rel (%p147) target = $region24
        $region23: #{tpu_custom_call.1} parent=19 // pred_region
          %s150 = sand.u32 %s16, 1
          %s151 = scalar_lea.sflag [#allocation6], %s150
          %s152 = sand.u32 %s47, 1
          %s153 = smul.addr %s152, 128
          %s154 = scalar_lea.vmem [#allocation5], %s153
          %s156 = ssub.s32 2048, 2048
          %157 = vsyncadd %s151, %s156
          %s158 = smul.addr %s16, 128
          %s159 = scalar_lea.hbm %s1, %s158
          %s160 = sshll.u32 %s154, 4
          %s161 = int_to_ptr.vmem [resolvable:$true] %s160
          %166 = dma.hbm_to_vmem [thread:$0]  %s159, 2048, %s161, %s151, 512, 128, 8
        $region24: #{tpu_custom_call.1} parent=19 // pred_fallthru
          _
        // Predicated region
        $region25: #{tpu_custom_call.1} parent=19 // pred_check
          %p167 = pneg %p83
        $region26: #{tpu_custom_call.1} parent=19 // pred_check_branch
          %169 = sbr.rel (%p167) target = $region28
        $region27: #{tpu_custom_call.1} parent=19 // pred_region
          %s170 = sand.u32 %s16, 1
          %s171 = scalar_lea.sflag [#allocation6], %s170
          %s172 = sand.u32 %s73, 1
          %s173 = scalar_lea.vmem [#allocation7], %s172
          %s175 = ssub.s32 16, 16
          %176 = vsyncadd %s171, %s175
          %s177 = smul.addr %s16, 16
          %s178 = scalar_lea.hbm %s2, %s177
          %s180 = sshll.u32 %s173, 4
          %s181 = int_to_ptr.vmem [resolvable:$true] %s180
          %183 = dma.hbm_to_vmem [thread:$0]  %s178, 16, %s181, %s171
        $region28: #{tpu_custom_call.1} parent=19 // pred_fallthru
          _
      $region20: #{tpu_custom_call.1} parent=5 // pred_fallthru
        _
      %p184 = scmp.le.s32.totalorder 1, %s16
      %p185 = scmp.lt.s32.totalorder %s16, 5
      %p186 = pnand %p184, %p185
      %p187 = pneg %p186
      // Predicated region
      $region29: #{tpu_custom_call.1} parent=5 // pred_check
        _
      $region30: #{tpu_custom_call.1} parent=5 // pred_check_branch
        %189 = sbr.rel (%p186) target = $region32
      $region31: #{tpu_custom_call.1} parent=5 // pred_region
        %s190 = ssub.s32 %s16, 1
        // Predicated region
        $region33: #{tpu_custom_call.1} parent=31 // pred_check
          %p191 = pneg %p37
        $region34: #{tpu_custom_call.1} parent=31 // pred_check_branch
          %193 = sbr.rel (%p191) target = $region36
        $region35: #{tpu_custom_call.1} parent=31 // pred_region
          %194 = dma.done [#allocation3], 1024
        $region36: #{tpu_custom_call.1} parent=31 // pred_fallthru
          _
        %s195 = sand.u32 %s21, 1
        %s196 = scalar_lea.sflag [#allocation6], %s195
        %s197 = sand.u32 %s50, 1
        %s198 = smul.addr %s197, 128
        %s199 = scalar_lea.vmem [#allocation5], %s198
        // Predicated region
        $region37: #{tpu_custom_call.1} parent=31 // pred_check
          %p200 = pneg %p63
        $region38: #{tpu_custom_call.1} parent=31 // pred_check_branch
          %202 = sbr.rel (%p200) target = $region40
        $region39: #{tpu_custom_call.1} parent=31 // pred_region
          %203 = dma.done %s196, 2048
        $region40: #{tpu_custom_call.1} parent=31 // pred_fallthru
          _
        %s204 = sand.u32 %s21, 1
        %s205 = scalar_lea.sflag [#allocation6], %s204
        %s206 = sand.u32 %s76, 1
        %s207 = scalar_lea.vmem [#allocation7], %s206
        // Predicated region
        $region41: #{tpu_custom_call.1} parent=31 // pred_check
          %p208 = pneg %p89
        $region42: #{tpu_custom_call.1} parent=31 // pred_check_branch
          %210 = sbr.rel (%p208) target = $region44
        $region43: #{tpu_custom_call.1} parent=31 // pred_region
          %211 = dma.done %s205, 16
        $region44: #{tpu_custom_call.1} parent=31 // pred_fallthru
          _
        %p212 = pneg %p37
        %p213 = pneg %p34
        %s214 = sand.u32 %s21, 1
        %s215 = scalar_lea.sflag [#allocation6], %s214
        %s216 = sand.u32 %s50, 1
        %s217 = smul.addr %s216, 128
        %s218 = scalar_lea.vmem [#allocation5], %s217
        %p219 = pneg %p63
        %p220 = pneg %p60
        %s221 = sand.u32 %s21, 1
        %s222 = scalar_lea.sflag [#allocation6], %s221
        %s223 = sand.u32 %s76, 1
        %s224 = scalar_lea.vmem [#allocation7], %s223
        %p225 = pneg %p89
        %p226 = pneg %p86
        %p227 = pneg %p115
        %p228 = pneg %p112
        %s229 = sand.u32 %s102, 1
        %s230 = scalar_lea.sflag [#allocation4], %s229
        %s231 = sand.u32 %s102, 1
        %s232 = smul.addr %s231, 64
        %s233 = scalar_lea.vmem [#allocation8], %s232
        %v234 = vld [vmem:[#allocation2] sm:$0xff]
        %v235 = vld [vmem:[#allocation2 + $0x8] sm:$0xff]
        %v236 = vld [vmem:[#allocation2 + $0x10] sm:$0xff]
        %v237 = vld [vmem:[#allocation2 + $0x18] sm:$0xff]
        %v238 = vld [vmem:[#allocation2 + $0x20] sm:$0xff]
        %v239 = vld [vmem:[#allocation2 + $0x28] sm:$0xff]
        %v240 = vld [vmem:[#allocation2 + $0x30] sm:$0xff]
        %v241 = vld [vmem:[#allocation2 + $0x38] sm:$0xff]
        %v242 = vld [vmem:[%s199] sm:$0xff]
        %v243 = vld [vmem:[%s199 + $0x8] sm:$0xff]
        %v244 = vld [vmem:[%s199 + $0x10] sm:$0xff]
        %v245 = vld [vmem:[%s199 + $0x18] sm:$0xff]
        %v246 = vld [vmem:[%s199 + $0x20] sm:$0xff]
        %v247 = vld [vmem:[%s199 + $0x28] sm:$0xff]
        %v248 = vld [vmem:[%s199 + $0x30] sm:$0xff]
        %v249 = vld [vmem:[%s199 + $0x38] sm:$0xff]
        %v250 = vld [vmem:[%s199 + $0x40] sm:$0xff]
        %v251 = vld [vmem:[%s199 + $0x48] sm:$0xff]
        %v252 = vld [vmem:[%s199 + $0x50] sm:$0xff]
        %v253 = vld [vmem:[%s199 + $0x58] sm:$0xff]
        %v254 = vld [vmem:[%s199 + $0x60] sm:$0xff]
        %v255 = vld [vmem:[%s199 + $0x68] sm:$0xff]
        %v256 = vld [vmem:[%s199 + $0x70] sm:$0xff]
        %v257 = vld [vmem:[%s199 + $0x78] sm:$0xff]
        %v258 = vld [vmem:[%s207] sm:$0x1]
        %v260 = vlaneseq
        %v261 = vshrl.u32 %v260, 7
        %v262 = vsub.s32 0, %v261
        %v263 = vrot.slane %v258, %v262
        %265 = vmatprep.subr.mxu0 0.0
        %266 = vmatpush1.msra.mxu0 %v257
        %267 = vmatprep.subr.mxu0 0.0
        %268 = vmatpush1.msra.mxu0 %v256
        %269 = vmatprep.subr.mxu0 0.0
        %270 = vmatpush1.msra.mxu0 %v255
        %271 = vmatprep.subr.mxu0 0.0
        %272 = vmatpush1.msra.mxu0 %v254
        %273 = vmatprep.subr.mxu0 0.0
        %274 = vmatpush1.msra.mxu0 %v253
        %275 = vmatprep.subr.mxu0 0.0
        %276 = vmatpush1.msra.mxu0 %v252
        %277 = vmatprep.subr.mxu0 0.0
        %278 = vmatpush1.msra.mxu0 %v251
        %279 = vmatprep.subr.mxu0 0.0
        %280 = vmatpush1.msra.mxu0 %v250
        %281 = vmatprep.subr.mxu0 0.0
        %282 = vmatpush1.msra.mxu0 %v249
        %283 = vmatprep.subr.mxu0 0.0
        %284 = vmatpush1.msra.mxu0 %v248
        %285 = vmatprep.subr.mxu0 0.0
        %286 = vmatpush1.msra.mxu0 %v247
        %287 = vmatprep.subr.mxu0 0.0
        %288 = vmatpush1.msra.mxu0 %v246
        %289 = vmatprep.subr.mxu0 0.0
        %290 = vmatpush1.msra.mxu0 %v245
        %291 = vmatprep.subr.mxu0 0.0
        %292 = vmatpush1.msra.mxu0 %v244
        %293 = vmatprep.subr.mxu0 0.0
        %294 = vmatpush1.msra.mxu0 %v243
        %295 = vmatprep.subr.mxu0 0.0
        %296 = vmatpush1.msra.mxu0 %v242
        %297 = vmatprep.subr.mxu0 0.0
        %298 = vmatpush2.msra.mxu0 0.0
        %299 = vmatprep.subr.mxu0 0.0
        %300 = vmatpush2.msra.mxu0 0.0
        %301 = vmatprep.subr.mxu0 0.0
        %302 = vmatpush2.msra.mxu0 0.0
        %303 = vmatprep.subr.mxu0 0.0
        %304 = vmatpush2.msra.mxu0 0.0
        %305 = vmatprep.subr.mxu0 0.0
        %306 = vmatpush2.msra.mxu0 0.0
        %307 = vmatprep.subr.mxu0 0.0
        %308 = vmatpush2.msra.mxu0 0.0
        %309 = vmatprep.subr.mxu0 0.0
        %310 = vmatpush2.msra.mxu0 0.0
        %311 = vmatprep.subr.mxu0 0.0
        %312 = vmatpush2.msra.mxu0 0.0
        %313 = vmatprep.subr.mxu0 0.0
        %314 = vmatpush2.msra.mxu0 0.0
        %315 = vmatprep.subr.mxu0 0.0
        %316 = vmatpush2.msra.mxu0 0.0
        %317 = vmatprep.subr.mxu0 0.0
        %318 = vmatpush2.msra.mxu0 0.0
        %319 = vmatprep.subr.mxu0 0.0
        %320 = vmatpush2.msra.mxu0 0.0
        %321 = vmatprep.subr.mxu0 0.0
        %322 = vmatpush2.msra.mxu0 0.0
        %323 = vmatprep.subr.mxu0 0.0
        %324 = vmatpush2.msra.mxu0 0.0
        %325 = vmatprep.subr.mxu0 0.0
        %326 = vmatpush2.msra.mxu0 0.0
        %327 = vmatprep.subr.mxu0 0.0
        %328 = vmatpush2.msra.mxu0 0.0
        %329 = vmatprep.mubr.f32.mxu0 0.0
        %330 = vmatmul.mubr.f32.gmra.mxu0 %v234
        %v331 = vpop.f32.mrf.mxu0
        %v332 = vadd.f32 %v263, %v331
        %v333 = vpop.f32.mrf.mxu0
        %334 = vmatprep.mubr.f32.mxu0 0.0
        %335 = vmatmul.mubr.f32.gmra.mxu0 %v235
        %v336 = vpop.f32.mrf.mxu0
        %v337 = vadd.f32 %v263, %v336
        %v338 = vpop.f32.mrf.mxu0
        %339 = vmatprep.mubr.f32.mxu0 0.0
        %340 = vmatmul.mubr.f32.gmra.mxu0 %v236
        %v341 = vpop.f32.mrf.mxu0
        %v342 = vadd.f32 %v263, %v341
        %v343 = vpop.f32.mrf.mxu0
        %344 = vmatprep.mubr.f32.mxu0 0.0
        %345 = vmatmul.mubr.f32.gmra.mxu0 %v237
        %v346 = vpop.f32.mrf.mxu0
        %v347 = vadd.f32 %v263, %v346
        %v348 = vpop.f32.mrf.mxu0
        %349 = vmatprep.mubr.f32.mxu0 0.0
        %350 = vmatmul.mubr.f32.gmra.mxu0 %v238
        %v351 = vpop.f32.mrf.mxu0
        %v352 = vadd.f32 %v263, %v351
        %v353 = vpop.f32.mrf.mxu0
        %354 = vmatprep.mubr.f32.mxu0 0.0
        %355 = vmatmul.mubr.f32.gmra.mxu0 %v239
        %v356 = vpop.f32.mrf.mxu0
        %v357 = vadd.f32 %v263, %v356
        %v358 = vpop.f32.mrf.mxu0
        %359 = vmatprep.mubr.f32.mxu0 0.0
        %360 = vmatmul.mubr.f32.gmra.mxu0 %v240
        %v361 = vpop.f32.mrf.mxu0
        %v362 = vadd.f32 %v263, %v361
        %v363 = vpop.f32.mrf.mxu0
        %364 = vmatprep.mubr.f32.mxu0 0.0
        %365 = vmatmul.mubr.f32.gmra.mxu0 %v241
        %v366 = vpop.f32.mrf.mxu0
        %v367 = vadd.f32 %v263, %v366
        %v368 = vpop.f32.mrf.mxu0
        %369 = vdwg.mxu0
        %370 = vst [vmem:[%s233] sm:$0xff] %v332
        %371 = vst [vmem:[%s233 + $0x8] sm:$0xff] %v337
        %372 = vst [vmem:[%s233 + $0x10] sm:$0xff] %v342
        %373 = vst [vmem:[%s233 + $0x18] sm:$0xff] %v347
        %374 = vst [vmem:[%s233 + $0x20] sm:$0xff] %v352
        %375 = vst [vmem:[%s233 + $0x28] sm:$0xff] %v357
        %376 = vst [vmem:[%s233 + $0x30] sm:$0xff] %v362
        %377 = vst [vmem:[%s233 + $0x38] sm:$0xff] %v367
        %s378 = sand.u32 %s102, 1
        %s379 = scalar_lea.sflag [#allocation4], %s378
        %s380 = sand.u32 %s102, 1
        %s381 = smul.addr %s380, 64
        %s382 = scalar_lea.vmem [#allocation8], %s381
        // Predicated region
        $region45: #{tpu_custom_call.1} parent=31 // pred_check
          %p383 = pneg %p112
        $region46: #{tpu_custom_call.1} parent=31 // pred_check_branch
          %385 = sbr.rel (%p383) target = $region48
        $region47: #{tpu_custom_call.1} parent=31 // pred_region
          %s387 = ssub.s32 1024, 1024
          %388 = vsyncadd %s379, %s387
          %s389 = smul.addr %s21, 128
          %s390 = scalar_lea.hbm %s3, %s389
          %s391 = sshll.u32 %s382, 4
          %s392 = int_to_ptr.vmem [resolvable:$true] %s391
          %397 = dma.vmem_to_hbm [thread:$0]  %s392, 1024, %s390, %s379, 128, 512, 8
        $region48: #{tpu_custom_call.1} parent=31 // pred_fallthru
          _
      $region32: #{tpu_custom_call.1} parent=5 // pred_fallthru
        _
      %p398 = scmp.le.s32.totalorder 2, %s16
      // Predicated region
      $region49: #{tpu_custom_call.1} parent=5 // pred_check
        %p399 = pneg %p398
      $region50: #{tpu_custom_call.1} parent=5 // pred_check_branch
        %401 = sbr.rel (%p399) target = $region52
      $region51: #{tpu_custom_call.1} parent=5 // pred_region
        %s402 = ssub.s32 %s16, 2
        // Predicated region
        $region53: #{tpu_custom_call.1} parent=51 // pred_check
          %p403 = pneg %p118
        $region54: #{tpu_custom_call.1} parent=51 // pred_check_branch
          %405 = sbr.rel (%p403) target = $region56
        $region55: #{tpu_custom_call.1} parent=51 // pred_region
          %s406 = sand.u32 %s103, 1
          %s407 = scalar_lea.sflag [#allocation4], %s406
          %s408 = sand.u32 %s103, 1
          %s409 = smul.addr %s408, 64
          %s410 = scalar_lea.vmem [#allocation8], %s409
          %411 = dma.done %s407, 1024
        $region56: #{tpu_custom_call.1} parent=51 // pred_fallthru
          _
      $region52: #{tpu_custom_call.1} parent=5 // pred_fallthru
        _
    $region6: #{tpu_custom_call.1} parent=1 // loop_footer
      %s20 = sadd.s32 1, %s16
    $region7: #{tpu_custom_call.1} parent=1 // loop_footer_branch
      %15 = sbr.rel target = $region3
    $region8: #{tpu_custom_call.1} parent=1 // loop_exit
      _
    %412 = vsyncpa [#allocation3], 1
    %s413 = scalar_lea.sflag [#allocation3], 1
    %414 = vsyncpa %s413, 1
    %415 = vsyncpa [#allocation6], 1
    %s416 = scalar_lea.sflag [#allocation6], 1
    %417 = vsyncpa %s416, 1
    %418 = vsyncpa [#allocation4], 1
    %s419 = scalar_lea.sflag [#allocation4], 1
    %420 = vsyncpa %s419, 1

</llo_original>
